<compile_context>
chip_gen: v5e
topology: v5e:2x2
jax: 0.10.0
libtpu: 0.0.40
codegen_flags: <defaults>
</compile_context>

<pallas_src>
import math

import jax
import jax.numpy as jnp
from jax.experimental import pallas as pl
from jax.experimental.pallas import tpu as pltpu


def _round_up(x, m):
    return ((x + m - 1) // m) * m


# ----------------------------------------------------------------------------
# Pallas kernel: one (TM, N) output slab of y = x @ W + b.
# W (K, N) and b (1, N) are VMEM-resident across the whole grid (their block
# index is constant), so they are fetched from HBM exactly once. The f32
# activation tile is cast to bf16 on the VPU, fed to the MXU with f32
# accumulation, bias-added and cast to the output dtype in one pass.
# ----------------------------------------------------------------------------
def _tokens_fc_kernel(x_ref, w_ref, b_ref, o_ref):
    x = x_ref[...].astype(jnp.bfloat16)          # cast in-kernel, no HBM round trip
    acc = jnp.dot(x, w_ref[...], preferred_element_type=jnp.float32)
    o_ref[...] = (acc + b_ref[...]).astype(o_ref.dtype)


def pallas_linear_wresident(x2d, w_bf16, b_row, *, out_dtype=jnp.float32,
                            tm_max=512):
    """y = x2d @ w_bf16 + b_row with a VMEM-resident weight.

    x2d    : (M, K) float32 activations (cast to bf16 inside the kernel)
    w_bf16 : (K, N) bfloat16, pre-packed once at init time
    b_row  : (1, N) float32
    Returns (M, N) in out_dtype.
    """
    M, K = x2d.shape
    Kw, N = w_bf16.shape
    assert K == Kw
    assert b_row.shape == (1, N)

    # Row tile: big enough to amortize per-grid-step overhead (weight is
    # resident so only x/out VMEM scales with it); multiple of 16 for
    # bf16/f32 sublane packing; never larger than the rounded-up M.
    tm = min(tm_max, _round_up(M, 16))
    Mp = _round_up(M, tm)

    xp = x2d
    if Mp != M:  # conditional padding: skipped entirely when M is aligned
        xp = jnp.zeros((Mp, K), x2d.dtype).at[:M, :].set(x2d)

    grid = (Mp // tm,)

    out = pl.pallas_call(
        _tokens_fc_kernel,
        out_shape=jax.ShapeDtypeStruct((Mp, N), out_dtype),
        grid_spec=pltpu.PrefetchScalarGridSpec(
            num_scalar_prefetch=0,
            grid=grid,
            in_specs=[
                # Activations stream over M; K is the full extent (no padding).
                pl.BlockSpec((tm, K), lambda i: (i, 0)),
                # Full weight, constant block index -> fetched once, resident.
                pl.BlockSpec((K, N), lambda i: (0, 0)),
                # Bias row, resident.
                pl.BlockSpec((1, N), lambda i: (0, 0)),
            ],
            out_specs=pl.BlockSpec((tm, N), lambda i: (i, 0)),
        ),
        compiler_params=pltpu.CompilerParams(
            dimension_semantics=("parallel",),
        ),
    )(xp, w_bf16, b_row)

    if Mp != M:
        out = out[:M]
    return out


# ----------------------------------------------------------------------------
# Parameter construction (deterministic, PyTorch nn.Linear default init style)
# with one-time pre-packing of the Pallas-side weight/bias.
# ----------------------------------------------------------------------------
def init_linear_params(key, in_features, out_features):
    kw, kb = jax.random.split(key)
    bound = 1.0 / math.sqrt(in_features)
    # PyTorch stores weight as (out, in); we keep (in, out) for x @ W.
    w = jax.random.uniform(kw, (in_features, out_features),
                           minval=-bound, maxval=bound, dtype=jnp.float32)
    b = jax.random.uniform(kb, (out_features,),
                           minval=-bound, maxval=bound, dtype=jnp.float32)
    return w, b


def pack_mmoe_params(w_cls, b_cls, w_tok, b_tok):
    """One-time packing: tokens-FC weight -> bf16, bias -> (1, N) f32 row."""
    return (w_cls, b_cls,
            w_tok.astype(jnp.bfloat16),
            b_tok.astype(jnp.float32).reshape(1, -1))


# ----------------------------------------------------------------------------
# MMoEEncoder.forward equivalent (given CLIP outputs), single jitted dispatch.
# ----------------------------------------------------------------------------
@jax.jit
def mmoe_encoder_forward(packed_params,
                         text_embeds,          # (B, d_text)        passthrough
                         image_embeds,         # (B, input_hidden_dim)
                         text_seq_tokens,      # (B, S, d_text_hid) passthrough
                         image_patch_tokens):  # (B, P, input_image_hidden_dim)
    w_cls, b_cls, w_tok_bf16, b_tok_row = packed_params

    # image_cls_fc: tiny (B rows) -> plain f32 dot inside the same jit,
    # no extra Pallas launch, exact nn.Linear math.
    image_embeds_out = image_embeds @ w_cls + b_cls

    # image_tokens_fc: flatten (B, P, Hv) -> (B*P, Hv), Pallas matmul with the
    # VMEM-resident weight, reshape back.
    B, P, Hv = image_patch_tokens.shape
    flat = image_patch_tokens.reshape(B * P, Hv)
    dv = w_tok_bf16.shape[1]
    tok_out = pallas_linear_wresident(flat, w_tok_bf16, b_tok_row).reshape(B, P, dv)

    return text_embeds, image_embeds_out, text_seq_tokens, tok_out


if __name__ == "__main__":
    # Small shapes consistent with the module's forward:
    B = 2                        # batch
    S = 8                        # text sequence length
    P = 8                        # image patch tokens (incl. CLS)
    d_text = 32                  # CLIP projection dim (text_embeds)
    d_text_hid = 32              # text encoder hidden (text_seq_tokens)
    input_hidden_dim = 32        # args.model.input_hidden_dim (image_embeds dim)
    input_image_hidden_dim = 48  # args.model.input_image_hidden_dim (patch dim)
    dv = 32                      # args.model.dv

    key = jax.random.PRNGKey(0)
    k1, k2, k3, k4, k5, k6 = jax.random.split(key, 6)

    # Synthetic (deterministic) CLIP outputs — stand-ins for the backbone.
    text_embeds = jax.random.normal(k1, (B, d_text), dtype=jnp.float32)
    image_embeds = jax.random.normal(k2, (B, input_hidden_dim), dtype=jnp.float32)
    text_seq_tokens = jax.random.normal(k3, (B, S, d_text_hid), dtype=jnp.float32)
    image_patch_tokens = jax.random.normal(
        k4, (B, P, input_image_hidden_dim), dtype=jnp.float32)

    # Deterministic parameters for the two Linear layers, packed once.
    w_cls, b_cls = init_linear_params(k5, input_hidden_dim, dv)
    w_tok, b_tok = init_linear_params(k6, input_image_hidden_dim, dv)
    packed = pack_mmoe_params(w_cls, b_cls, w_tok, b_tok)

    outs = mmoe_encoder_forward(packed, text_embeds, image_embeds,
                                text_seq_tokens, image_patch_tokens)
    outs = jax.block_until_ready(outs)

    # ---- Reference checks -------------------------------------------------
    # cls FC: exact f32 nn.Linear math.
    ref_img = image_embeds @ w_cls + b_cls
    # tokens FC: same math as nn.Linear with inputs/weights rounded to bf16
    # (the kernel's compute dtype) and f32 accumulation.
    xf = image_patch_tokens.astype(jnp.bfloat16).astype(jnp.float32)
    wf = w_tok.astype(jnp.bfloat16).astype(jnp.float32)
    ref_tok = xf @ wf + b_tok

    assert outs[0].shape == (B, d_text)
    assert outs[1].shape == (B, dv)
    assert outs[2].shape == (B, S, d_text_hid)
    assert outs[3].shape == (B, P, dv)
    assert jnp.allclose(outs[0], text_embeds)
    assert jnp.allclose(outs[2], text_seq_tokens)
    assert jnp.allclose(outs[1], ref_img, atol=1e-4, rtol=1e-4)
    assert jnp.allclose(outs[3], ref_tok, atol=1e-3, rtol=1e-3)
    # Sanity vs. pure-f32 nn.Linear (bf16 rounding tolerance on tokens path).
    assert jnp.allclose(outs[3], image_patch_tokens @ w_tok + b_tok, atol=5e-2)

    print("KERNEL_OK")
</pallas_src>

<mosaic_0001>
module attributes {stable_mosaic.version = 11 : i64} {
  func.func @_tokens_fc_kernel(%arg0: i32, %arg1: memref<16x48xf32, #tpu.memory_space<vmem>>, %arg2: memref<48x32xbf16, #tpu.memory_space<vmem>>, %arg3: memref<1x32xf32, #tpu.memory_space<vmem>>, %arg4: memref<16x32xf32, #tpu.memory_space<vmem>>) attributes {dimension_semantics = [#tpu.dimension_semantics<parallel>], iteration_bounds = array<i64: 1>, scalar_prefetch = 0 : i64, scratch_operands = 0 : i64, tpu.core_type = #tpu.core_type<tc>, window_params = [{transform_indices = @transform_0, window_bounds = array<i64: 16, 48>}, {pipeline_mode = #tpu.pipeline_mode<synchronous>, transform_indices = @transform_1, window_bounds = array<i64: 48, 32>}, {pipeline_mode = #tpu.pipeline_mode<synchronous>, transform_indices = @transform_2, window_bounds = array<i64: 1, 32>}, {transform_indices = @transform_3, window_bounds = array<i64: 16, 32>}]} {
    %c0 = arith.constant 0 : index
    %c0_0 = arith.constant 0 : index
    %0 = vector.load %arg1[%c0, %c0_0] : memref<16x48xf32, #tpu.memory_space<vmem>>, vector<16x48xf32>
    %1 = arith.truncf %0 : vector<16x48xf32> to vector<16x48xbf16>
    %c0_1 = arith.constant 0 : index
    %c0_2 = arith.constant 0 : index
    %2 = vector.load %arg2[%c0_1, %c0_2] : memref<48x32xbf16, #tpu.memory_space<vmem>>, vector<48x32xbf16>
    %cst = arith.constant dense<0.000000e+00> : vector<16x32xf32>
    %3 = tpu.matmul %1, %2, %cst {dimension_numbers = #tpu.dot_dimension_numbers<[1], [0], [0], [1], [0, 0, 1, 1], [], []>} : vector<16x48xbf16>, vector<48x32xbf16>, vector<16x32xf32> -> vector<16x32xf32>
    %c0_3 = arith.constant 0 : index
    %c0_4 = arith.constant 0 : index
    %4 = vector.load %arg3[%c0_3, %c0_4] : memref<1x32xf32, #tpu.memory_space<vmem>>, vector<1x32xf32>
    %5 = vector.broadcast %4 : vector<1x32xf32> to vector<16x32xf32>
    %6 = arith.addf %3, %5 : vector<16x32xf32>
    %c0_5 = arith.constant 0 : index
    %c0_6 = arith.constant 0 : index
    %7 = vector.load %arg4[%c0_5, %c0_6] : memref<16x32xf32, #tpu.memory_space<vmem>>, vector<16x32xf32>
    tpu.vector_store %arg4[%c0_5, %c0_6], %6 {strides = array<i32>} : memref<16x32xf32, #tpu.memory_space<vmem>>, vector<16x32xf32>,
    return
  }
  func.func @transform_0(%arg0: i32) -> (i32, i32) {
    %c0_i32 = arith.constant 0 : i32
    %c0_i32_0 = arith.constant 0 : i32
    return %arg0, %c0_i32 : i32, i32
  }
  func.func @transform_1(%arg0: i32) -> (i32, i32) {
    %c0_i32 = arith.constant 0 : i32
    %c0_i32_0 = arith.constant 0 : i32
    %c0_i32_1 = arith.constant 0 : i32
    return %c0_i32, %c0_i32_0 : i32, i32
  }
  func.func @transform_2(%arg0: i32) -> (i32, i32) {
    %c0_i32 = arith.constant 0 : i32
    %c0_i32_0 = arith.constant 0 : i32
    %c0_i32_1 = arith.constant 0 : i32
    return %c0_i32, %c0_i32_0 : i32, i32
  }
  func.func @transform_3(%arg0: i32) -> (i32, i32) {
    %c0_i32 = arith.constant 0 : i32
    %c0_i32_0 = arith.constant 0 : i32
    return %arg0, %c0_i32 : i32, i32
  }
}

</mosaic_0001>

<llo_original>
// kernel: mmoe_encoder_forward.1
$region0: #{mmoe_encoder_forward.1}
  #allocation0 [shape = 'u32[]', space=smem, size = 0x4, offset = 0x4, fixed_abs, tag = 'smem constant byte address 0x4 - core index']
  #allocation1 [shape = 'u32[72,128]{1,0:T(1,128)}', space=vmem, size = 0x9000, scoped, tag = 'internal scratch']
  %s0 = inlined_call_operand.vmem [shape: f32[16,48], index: 0, kind: input, shape index: {}]
  %s1 = inlined_call_operand.vmem [shape: bf16[48,32], index: 1, kind: input, shape index: {}]
  %s2 = inlined_call_operand.vmem [shape: f32[1,32], index: 2, kind: input, shape index: {}]
  %s3 = inlined_call_operand.hbm [shape: f32[16,32], index: 3, kind: output, shape index: {}]
  %s4 = sld [smem:[#allocation0]]
  $region22: #{mmoe_encoder_forward.1} parent=0
    _
  %s6 = ssub.s32 1, %s4
  %s7 = scalar_select 0, %s6, %s4
  $region1: #{mmoe_encoder_forward.1} parent=0
    #allocation2 [shape = 'u8[8192]{0}', space=vmem, size = 0x2000, scoped, tag = 'output window, operand 0, single buffered']
    #allocation3 [shape = 's32[1]{0}', space=sflag, size = 0x4, scoped, tag = 'scoped memory for mmoe_encoder_forward.1']
    %8 = vsyncpa [#allocation3], 0
    // Predicated region
    $region2: #{mmoe_encoder_forward.1} parent=1 // pred_check
      _
    $region3: #{mmoe_encoder_forward.1} parent=1 // pred_check_branch
      %10 = sbr.rel (0) target = $region5
    $region4: #{mmoe_encoder_forward.1} parent=1 // pred_region
      _
    $region5: #{mmoe_encoder_forward.1} parent=1 // pred_fallthru
      _
    // Predicated region
    $region6: #{mmoe_encoder_forward.1} parent=1 // pred_check
      _
    $region7: #{mmoe_encoder_forward.1} parent=1 // pred_check_branch
      %12 = sbr.rel (0) target = $region9
    $region8: #{mmoe_encoder_forward.1} parent=1 // pred_region
      _
    $region9: #{mmoe_encoder_forward.1} parent=1 // pred_fallthru
      _
    // Predicated region
    $region10: #{mmoe_encoder_forward.1} parent=1 // pred_check
      _
    $region11: #{mmoe_encoder_forward.1} parent=1 // pred_check_branch
      %14 = sbr.rel (0) target = $region13
    $region12: #{mmoe_encoder_forward.1} parent=1 // pred_region
      _
    $region13: #{mmoe_encoder_forward.1} parent=1 // pred_fallthru
      _
    %v16 = vld [vmem:[%s0] sm:$0xff]
    %v17 = vld [vmem:[%s0 + $0x8] sm:$0xff]
    %v18 = vpack.c.bf16 %v17, %v16
    %v19 = vld [vmem:[%s1] sm:$0xf]
    %v20 = vld [vmem:[%s1 + $0x4] sm:$0xf]
    %v21 = vld [vmem:[%s1 + $0x8] sm:$0xf]
    %v22 = vld [vmem:[%s1 + $0xc] sm:$0xf]
    %v23 = vld [vmem:[%s1 + $0x10] sm:$0xf]
    %v24 = vld [vmem:[%s1 + $0x14] sm:$0xf]
    %v25 = vld [vmem:[%s2] sm:$0x1]
    %v27 = vperm.slane %v25, 0
    %v35 = vunpack.c.l.b16 %v19
    %v36 = vunpack.c.l.b16 %v20
    %v37 = vunpack.c.l.b16 %v21
    %v38 = vunpack.c.l.b16 %v22
    %v39 = vunpack.c.l.b16 %v23
    %v40 = vunpack.c.l.b16 %v24
    %v41 = vpack.c.b16 %v36, %v35
    %v42 = vpack.c.b16 %v38, %v37
    %v43 = vpack.c.b16 %v40, %v39
    %vm47 = vcmask 392192
    %v49 = vsel %vm47, %v18, 0
    %51 = vmatpush.bf16.msra.mxu0 0
    %52 = vmatpush.bf16.msra.mxu0 0
    %53 = vmatpush.bf16.msra.mxu0 0
    %54 = vmatpush.bf16.msra.mxu0 0
    %55 = vmatpush.bf16.msra.mxu0 0
    %56 = vmatpush.bf16.msra.mxu0 %v43
    %57 = vmatpush.bf16.msra.mxu0 %v42
    %58 = vmatpush.bf16.msra.mxu0 %v41
    %59 = vmatmul.bf16.gmra.mxu0 %v49
    %v60 = vpop.f32.mrf.mxu0
    %v61 = vadd.f32 %v27, %v60
    %v62 = vpop.f32.mrf.mxu0
    %v63 = vadd.f32 %v27, %v62
    %64 = vdwg.mxu0
    %vm65 = vcmask 261120
    %66 = vst.msk [vmem:[#allocation2] sm:$0xff] %vm65, %v61
    %67 = vst.msk [vmem:[#allocation2 + $0x8] sm:$0xff] %vm65, %v63
    // Predicated region
    $region14: #{mmoe_encoder_forward.1} parent=1 // pred_check
      _
    $region15: #{mmoe_encoder_forward.1} parent=1 // pred_check_branch
      %69 = sbr.rel (0) target = $region17
    $region16: #{mmoe_encoder_forward.1} parent=1 // pred_region
      %71 = vsyncadd [#allocation3], 0
      %s72 = sshll.u32 [#allocation2], 4
      %s73 = int_to_ptr.vmem [resolvable:$true] %s72
      %s74 = sshll.u32 %s3, 4
      %s75 = int_to_ptr.hbm [resolvable:$true] %s74
      %80 = dma.vmem_to_hbm [thread:$0]  %s73, 256, %s75, [#allocation3], 128, 128, 8
    $region17: #{mmoe_encoder_forward.1} parent=1 // pred_fallthru
      _
    // Predicated region
    $region18: #{mmoe_encoder_forward.1} parent=1 // pred_check
      _
    $region19: #{mmoe_encoder_forward.1} parent=1 // pred_check_branch
      %82 = sbr.rel (0) target = $region21
    $region20: #{mmoe_encoder_forward.1} parent=1 // pred_region
      %84 = dma.done [#allocation3], 256
    $region21: #{mmoe_encoder_forward.1} parent=1 // pred_fallthru
      _
    %85 = vsyncpa [#allocation3], 1

</llo_original>
